<compile_context>
chip_gen: v5e
topology: v5e:2x2
jax: 0.10.0
libtpu: 0.0.40
codegen_flags: <defaults>
</compile_context>

<pallas_src>
import functools

import jax
import jax.numpy as jnp
from jax import lax
from jax.experimental import pallas as pl
from jax.experimental.pallas import tpu as pltpu


def _round_up(x, m):
    return ((x + m - 1) // m) * m


# ---------------------------------------------------------------------------
# Fast path: tables resident in VMEM, in-kernel one-hot gather on the MXU.
# ---------------------------------------------------------------------------
def _interac_vmem_kernel(idx1_ref, idx2_ref, t1_ref, t2_ref, out_ref):
    tb = out_ref.shape[0]
    v1 = t1_ref.shape[0]
    v2 = t2_ref.shape[0]
    f32 = jnp.float32
    # One-hot row selectors: (tb, 1) indices vs a lane iota.  The tables were
    # zero-padded to a vocab multiple of 128, so the matmul K dim is MXU
    # aligned and padded rows are never selected (indices were clamped).
    oh1 = (idx1_ref[...] == lax.broadcasted_iota(jnp.int32, (tb, v1), 1)).astype(f32)
    oh2 = (idx2_ref[...] == lax.broadcasted_iota(jnp.int32, (tb, v2), 1)).astype(f32)
    e1 = jnp.dot(oh1, t1_ref[...].astype(f32), preferred_element_type=f32)
    e2 = jnp.dot(oh2, t2_ref[...].astype(f32), preferred_element_type=f32)
    out_ref[...] = (e1 * e2).astype(out_ref.dtype)


# ---------------------------------------------------------------------------
# Large-vocab path: tables stay in HBM, per-row DMA gather into VMEM scratch.
# ---------------------------------------------------------------------------
def _interac_hbm_kernel(first_ref, second_ref,      # scalar-prefetch indices (SMEM)
                        emb1_hbm, emb2_hbm,          # embedding tables (HBM)
                        out_ref,                     # (tb, emb) output tile (VMEM)
                        e1_buf, e2_buf,              # (tb, emb) VMEM gather buffers
                        sems,                        # (2,) DMA semaphores
                        *, unroll):
    i = pl.program_id(0)
    tb = out_ref.shape[0]
    base = i * tb

    # Issue all 2*tb row-gather DMAs (HBM -> VMEM) up front so they overlap.
    # Indices were clamped in the wrapper; padded rows fetch row 0 (copy count
    # kept static so the single full-buffer wait below matches exactly).
    def issue(r, carry):
        f = first_ref[base + r]
        s = second_ref[base + r]
        pltpu.make_async_copy(emb1_hbm.at[pl.ds(f, 1)],
                              e1_buf.at[pl.ds(r, 1)],
                              sems.at[0]).start()
        pltpu.make_async_copy(emb2_hbm.at[pl.ds(s, 1)],
                              e2_buf.at[pl.ds(r, 1)],
                              sems.at[1]).start()
        return carry

    lax.fori_loop(0, tb, issue, 0, unroll=unroll)

    # One wait per buffer: the DMA semaphore counts transferred bytes, so a
    # full-buffer descriptor waits for exactly the sum of the tb row copies.
    pltpu.make_async_copy(e1_buf, e1_buf, sems.at[0]).wait()
    pltpu.make_async_copy(e2_buf, e2_buf, sems.at[1]).wait()

    # Pure VPU elementwise product on a lane-dense (tb, emb) tile (f32 math).
    out_ref[...] = (e1_buf[...].astype(jnp.float32) *
                    e2_buf[...].astype(jnp.float32)).astype(out_ref.dtype)


_FAST_PATH_MAX_VOCAB = 1024                    # one-hot MXU gather: small vocab only
_FAST_PATH_MAX_TABLE_BYTES = 8 * 1024 * 1024   # resident-tables budget (v7x-safe)
_VMEM_LIMIT_BYTES = 32 * 1024 * 1024           # <= physical VMEM on v5e/v6e/v7x


def interac_forward(first, second, emb1_w, emb2_w, *, tb=256, out_dtype=None,
                    force_hbm_path=False):
    """Interac forward: emb1[first] * emb2[second].

    first, second: (B,) integer indices.  Returns (B, emb) in `out_dtype`
    (default: the tables' result dtype); arithmetic is done in f32.
    Out-of-range indices are clamped (PyTorch nn.Embedding would raise).
    """
    B = int(first.shape[0])
    v1, emb = emb1_w.shape
    v2, emb2 = emb2_w.shape
    assert emb == emb2, "embedding dims must match"
    if out_dtype is None:
        out_dtype = jnp.result_type(emb1_w.dtype, emb2_w.dtype)

    # Batch tile: multiple of 8 sublanes, no larger than the (padded) batch.
    tb = max(8, min(_round_up(tb, 8), _round_up(B, 8)))
    b_pad = _round_up(B, tb)
    n_blocks = b_pad // tb

    # Clamp once here (hoisted out of the kernel / DMA-issue loop).
    first_i = jnp.clip(first.astype(jnp.int32), 0, v1 - 1)
    second_i = jnp.clip(second.astype(jnp.int32), 0, v2 - 1)

    v1_pad = _round_up(v1, 128)
    v2_pad = _round_up(v2, 128)
    tables_bytes = (v1_pad * emb * jnp.dtype(emb1_w.dtype).itemsize
                    + v2_pad * emb * jnp.dtype(emb2_w.dtype).itemsize)
    use_fast = (not force_hbm_path
                and v1_pad <= _FAST_PATH_MAX_VOCAB
                and v2_pad <= _FAST_PATH_MAX_VOCAB
                and tables_bytes <= _FAST_PATH_MAX_TABLE_BYTES)

    compiler_params = pltpu.CompilerParams(
        dimension_semantics=("parallel",),
        vmem_limit_bytes=_VMEM_LIMIT_BYTES)

    if use_fast:
        # --- VMEM-resident tables + in-kernel one-hot gather ----------------
        emb1_p = (emb1_w if v1_pad == v1 else
                  jnp.zeros((v1_pad, emb), emb1_w.dtype).at[:v1].set(emb1_w))
        emb2_p = (emb2_w if v2_pad == v2 else
                  jnp.zeros((v2_pad, emb), emb2_w.dtype).at[:v2].set(emb2_w))
        idx1 = jnp.zeros((b_pad, 1), jnp.int32).at[:B, 0].set(first_i)
        idx2 = jnp.zeros((b_pad, 1), jnp.int32).at[:B, 0].set(second_i)

        y = pl.pallas_call(
            _interac_vmem_kernel,
            out_shape=jax.ShapeDtypeStruct((b_pad, emb), out_dtype),
            grid=(n_blocks,),
            in_specs=[
                pl.BlockSpec((tb, 1), lambda i: (i, 0)),
                pl.BlockSpec((tb, 1), lambda i: (i, 0)),
                # Full-table blocks with a constant index_map: DMA'd into VMEM
                # once and resident across every grid step.
                pl.BlockSpec((v1_pad, emb), lambda i: (0, 0)),
                pl.BlockSpec((v2_pad, emb), lambda i: (0, 0)),
            ],
            out_specs=pl.BlockSpec((tb, emb), lambda i: (i, 0)),
            compiler_params=compiler_params,
        )(idx1, idx2, emb1_p, emb2_p)
        return y[:B]

    # --- Large-vocab fallback: HBM tables, per-row DMA gather ---------------
    first_pad = jnp.zeros((b_pad,), jnp.int32).at[:B].set(first_i)
    second_pad = jnp.zeros((b_pad,), jnp.int32).at[:B].set(second_i)

    kernel = functools.partial(_interac_hbm_kernel, unroll=min(8, tb))

    y = pl.pallas_call(
        kernel,
        out_shape=jax.ShapeDtypeStruct((b_pad, emb), out_dtype),
        grid_spec=pltpu.PrefetchScalarGridSpec(
            num_scalar_prefetch=2,
            grid=(n_blocks,),
            in_specs=[
                pl.BlockSpec(memory_space=pl.ANY),   # emb1 table stays in HBM
                pl.BlockSpec(memory_space=pl.ANY),   # emb2 table stays in HBM
            ],
            out_specs=pl.BlockSpec((tb, emb), lambda i, f, s: (i, 0)),
            scratch_shapes=[
                pltpu.VMEM((tb, emb), emb1_w.dtype),
                pltpu.VMEM((tb, emb), emb2_w.dtype),
                pltpu.SemaphoreType.DMA((2,)),
            ],
        ),
        compiler_params=compiler_params,
    )(first_pad, second_pad, emb1_w, emb2_w)
    return y[:B]


if __name__ == "__main__":
    # Module hyperparameters (small, consistent with Interac.__init__).
    first_size, second_size, emb_size = 16, 32, 128
    batch = 256

    key = jax.random.PRNGKey(0)
    k1, k2, k3, k4 = jax.random.split(key, 4)

    # emb1.weight ~ N(0, 1e-5); emb2.weight uses nn.Embedding default N(0, 1).
    emb1_w = jax.random.normal(k1, (first_size, emb_size), jnp.float32) * 1e-5
    emb2_w = jax.random.normal(k2, (second_size, emb_size), jnp.float32)

    first = jax.random.randint(k3, (batch,), 0, first_size, dtype=jnp.int32)
    second = jax.random.randint(k4, (batch,), 0, second_size, dtype=jnp.int32)

    # Reference: plain-JAX gather + multiply (matches torch semantics).
    y_ref = emb1_w[first] * emb2_w[second]

    # Fast path: VMEM-resident tables, one-hot MXU gather (2 grid steps).
    y_fast = jax.block_until_ready(
        interac_forward(first, second, emb1_w, emb2_w, tb=128))
    assert y_fast.shape == (batch, emb_size)
    assert jnp.allclose(y_fast, y_ref, atol=1e-6, rtol=1e-5)

    # Large-vocab fallback (forced here to validate): HBM tables, per-row DMA
    # gather, single full-buffer wait per scratch buffer (4 grid steps).
    y_hbm = jax.block_until_ready(
        interac_forward(first, second, emb1_w, emb2_w, tb=64,
                        force_hbm_path=True))
    assert y_hbm.shape == (batch, emb_size)
    assert jnp.allclose(y_hbm, y_ref, atol=1e-6, rtol=1e-5)

    print("KERNEL_OK")
</pallas_src>

<mosaic_0001>
module attributes {stable_mosaic.version = 11 : i64} {
  func.func @_interac_vmem_kernel(%arg0: i32, %arg1: memref<128x1xi32, #tpu.memory_space<vmem>>, %arg2: memref<128x1xi32, #tpu.memory_space<vmem>>, %arg3: memref<128x128xf32, #tpu.memory_space<vmem>>, %arg4: memref<128x128xf32, #tpu.memory_space<vmem>>, %arg5: memref<128x128xf32, #tpu.memory_space<vmem>>) attributes {dimension_semantics = [#tpu.dimension_semantics<parallel>], iteration_bounds = array<i64: 2>, scalar_prefetch = 0 : i64, scratch_operands = 0 : i64, tpu.core_type = #tpu.core_type<tc>, window_params = [{transform_indices = @transform_0, window_bounds = array<i64: 128, 1>}, {transform_indices = @transform_1, window_bounds = array<i64: 128, 1>}, {pipeline_mode = #tpu.pipeline_mode<synchronous>, transform_indices = @transform_2, window_bounds = array<i64: 128, 128>}, {pipeline_mode = #tpu.pipeline_mode<synchronous>, transform_indices = @transform_3, window_bounds = array<i64: 128, 128>}, {transform_indices = @transform_4, window_bounds = array<i64: 128, 128>}]} {
    %c0 = arith.constant 0 : index
    %c0_0 = arith.constant 0 : index
    %0 = vector.load %arg1[%c0, %c0_0] : memref<128x1xi32, #tpu.memory_space<vmem>>, vector<128x1xi32>
    %1 = tpu.iota {dimensions = array<i32: 1>} : vector<128x128xi32>
    %2 = vector.broadcast %0 : vector<128x1xi32> to vector<128x128xi32>
    %3 = arith.cmpi eq, %2, %1 : vector<128x128xi32>
    %4 = arith.extui %3 : vector<128x128xi1> to vector<128x128xi32>
    %5 = arith.sitofp %4 : vector<128x128xi32> to vector<128x128xf32>
    %c0_1 = arith.constant 0 : index
    %c0_2 = arith.constant 0 : index
    %6 = vector.load %arg2[%c0_1, %c0_2] : memref<128x1xi32, #tpu.memory_space<vmem>>, vector<128x1xi32>
    %7 = tpu.iota {dimensions = array<i32: 1>} : vector<128x128xi32>
    %8 = vector.broadcast %6 : vector<128x1xi32> to vector<128x128xi32>
    %9 = arith.cmpi eq, %8, %7 : vector<128x128xi32>
    %10 = arith.extui %9 : vector<128x128xi1> to vector<128x128xi32>
    %11 = arith.sitofp %10 : vector<128x128xi32> to vector<128x128xf32>
    %c0_3 = arith.constant 0 : index
    %c0_4 = arith.constant 0 : index
    %12 = vector.load %arg3[%c0_3, %c0_4] : memref<128x128xf32, #tpu.memory_space<vmem>>, vector<128x128xf32>
    %cst = arith.constant dense<0.000000e+00> : vector<128x128xf32>
    %13 = tpu.matmul %5, %12, %cst {dimension_numbers = #tpu.dot_dimension_numbers<[1], [0], [0], [1], [0, 0, 1, 1], [], []>} : vector<128x128xf32>, vector<128x128xf32>, vector<128x128xf32> -> vector<128x128xf32>
    %c0_5 = arith.constant 0 : index
    %c0_6 = arith.constant 0 : index
    %14 = vector.load %arg4[%c0_5, %c0_6] : memref<128x128xf32, #tpu.memory_space<vmem>>, vector<128x128xf32>
    %cst_7 = arith.constant dense<0.000000e+00> : vector<128x128xf32>
    %15 = tpu.matmul %11, %14, %cst_7 {dimension_numbers = #tpu.dot_dimension_numbers<[1], [0], [0], [1], [0, 0, 1, 1], [], []>} : vector<128x128xf32>, vector<128x128xf32>, vector<128x128xf32> -> vector<128x128xf32>
    %16 = arith.mulf %13, %15 : vector<128x128xf32>
    %c0_8 = arith.constant 0 : index
    %c0_9 = arith.constant 0 : index
    %17 = vector.load %arg5[%c0_8, %c0_9] : memref<128x128xf32, #tpu.memory_space<vmem>>, vector<128x128xf32>
    tpu.vector_store %arg5[%c0_8, %c0_9], %16 {strides = array<i32>} : memref<128x128xf32, #tpu.memory_space<vmem>>, vector<128x128xf32>,
    return
  }
  func.func @transform_0(%arg0: i32) -> (i32, i32) {
    %c0_i32 = arith.constant 0 : i32
    %c0_i32_0 = arith.constant 0 : i32
    return %arg0, %c0_i32 : i32, i32
  }
  func.func @transform_1(%arg0: i32) -> (i32, i32) {
    %c0_i32 = arith.constant 0 : i32
    %c0_i32_0 = arith.constant 0 : i32
    return %arg0, %c0_i32 : i32, i32
  }
  func.func @transform_2(%arg0: i32) -> (i32, i32) {
    %c0_i32 = arith.constant 0 : i32
    %c0_i32_0 = arith.constant 0 : i32
    %c0_i32_1 = arith.constant 0 : i32
    return %c0_i32, %c0_i32_0 : i32, i32
  }
  func.func @transform_3(%arg0: i32) -> (i32, i32) {
    %c0_i32 = arith.constant 0 : i32
    %c0_i32_0 = arith.constant 0 : i32
    %c0_i32_1 = arith.constant 0 : i32
    return %c0_i32, %c0_i32_0 : i32, i32
  }
  func.func @transform_4(%arg0: i32) -> (i32, i32) {
    %c0_i32 = arith.constant 0 : i32
    %c0_i32_0 = arith.constant 0 : i32
    return %arg0, %c0_i32 : i32, i32
  }
}

</mosaic_0001>

<llo_original>
// kernel: tpu_custom_call.1
$region0: #{tpu_custom_call.1}
  #allocation0 [shape = 'u32[]', space=smem, size = 0x4, offset = 0x4, fixed_abs, tag = 'smem constant byte address 0x4 - core index']
  #allocation1 [shape = 'u32[72,128]{1,0:T(1,128)}', space=vmem, size = 0x9000, scoped, tag = 'internal scratch']
  %s0 = inlined_call_operand.vmem [shape: s32[256,1], index: 0, kind: input, shape index: {}]
  %s1 = inlined_call_operand.vmem [shape: s32[256,1], index: 1, kind: input, shape index: {}]
  %s2 = inlined_call_operand.vmem [shape: f32[128,128], index: 2, kind: input, shape index: {}]
  %s3 = inlined_call_operand.vmem [shape: f32[128,128], index: 3, kind: input, shape index: {}]
  %s4 = inlined_call_operand.hbm [shape: f32[256,128], index: 4, kind: output, shape index: {}]
  %s5 = sld [smem:[#allocation0]]
  $region49: #{tpu_custom_call.1} parent=0
    _
  %s7 = ssub.s32 1, %s5
  %s8 = scalar_select 0, %s7, %s5
  $region1: #{tpu_custom_call.1} parent=0
    #allocation2 [shape = 'u8[131072]{0}', space=vmem, size = 0x20000, scoped, tag = 'output window, operand 0']
    #allocation3 [shape = 's32[2]{0}', space=sflag, size = 0x8, scoped, tag = 'scoped memory for tpu_custom_call.1']
    %9 = vsyncpa [#allocation3], 0
    %s10 = scalar_lea.sflag [#allocation3], 1
    %11 = vsyncpa %s10, 0
    loop: start=0, step=1, limit=4
    $region2: #{tpu_custom_call.1} parent=1 // loop_pre_header
      _
    $region3: #{tpu_custom_call.1} parent=1 // loop_header
      %s13 = sphi 0, %s17
      %p14 = scmp.ge.s32.totalorder %s13, 4
      %s23 = sphi 0, %s25
      %s26 = sphi 0, %s23
      %s27 = sphi 0, %s26
      %s43 = sphi 0, %s27
      %s49 = sphi 0, %s51
      %s52 = sphi 0, %s49
      %s53 = sphi 0, %s52
      %s69 = sphi 0, %s53
      %s73 = sphi 0, %s73
      %s75 = sphi 0, %s73
      %s76 = sphi 0, %s75
      %s90 = sphi 0, %s76
      %s94 = sphi 0, %s94
      %s96 = sphi 0, %s94
      %s97 = sphi 0, %s96
      %s111 = sphi 0, %s97
      %s117 = sphi 0, %s119
      %s120 = sphi 0, %s117
      %s121 = sphi 0, %s120
      %s137 = sphi 0, %s121
    $region4: #{tpu_custom_call.1} parent=1 // loop_header_branch
      %16 = sbr.rel (%p14) target = $region8
    $region5: #{tpu_custom_call.1} parent=1 // loop_body
      %s18 = ssub.s32 %s13, 1
      %s19 = ssub.s32 %s13, 2
      %s20 = sadd.s32 %s13, 1
      %s21 = ssub.s32 %s13, %s20
      %p22 = scmp.eq.s32.totalorder %s21, 0
      %s24 = sadd.s32 %s23, 1
      %s25 = scalar_select %p22, %s23, %s24
      %p28 = pneg %p22
      %p29 = scmp.eq.s32.totalorder %s13, 1
      %p30 = por %p28, %p29
      %p31 = scmp.ne.s32.totalorder %s23, %s26
      %p32 = scmp.eq.s32.totalorder %s13, 0
      %p33 = por %p31, %p32
      %p34 = scmp.ne.s32.totalorder %s23, %s26
      %p35 = scmp.eq.s32.totalorder %s18, 1
      %p36 = por %p34, %p35
      %p37 = scmp.ne.s32.totalorder %s26, %s27
      %p38 = scmp.eq.s32.totalorder %s18, 0
      %p39 = por %p37, %p38
      %p40 = scmp.ne.s32.totalorder %s26, %s27
      %p41 = scmp.eq.s32.totalorder %s19, 1
      %p42 = por %p40, %p41
      %p44 = scmp.ne.s32.totalorder %s27, %s43
      %p45 = scmp.eq.s32.totalorder %s19, 0
      %p46 = por %p44, %p45
      %s47 = ssub.s32 %s13, %s20
      %p48 = scmp.eq.s32.totalorder %s47, 0
      %s50 = sadd.s32 %s49, 1
      %s51 = scalar_select %p48, %s49, %s50
      %p54 = pneg %p48
      %p55 = scmp.eq.s32.totalorder %s13, 1
      %p56 = por %p54, %p55
      %p57 = scmp.ne.s32.totalorder %s49, %s52
      %p58 = scmp.eq.s32.totalorder %s13, 0
      %p59 = por %p57, %p58
      %p60 = scmp.ne.s32.totalorder %s49, %s52
      %p61 = scmp.eq.s32.totalorder %s18, 1
      %p62 = por %p60, %p61
      %p63 = scmp.ne.s32.totalorder %s52, %s53
      %p64 = scmp.eq.s32.totalorder %s18, 0
      %p65 = por %p63, %p64
      %p66 = scmp.ne.s32.totalorder %s52, %s53
      %p67 = scmp.eq.s32.totalorder %s19, 1
      %p68 = por %p66, %p67
      %p70 = scmp.ne.s32.totalorder %s53, %s69
      %p71 = scmp.eq.s32.totalorder %s19, 0
      %p72 = por %p70, %p71
      %s74 = sadd.s32 %s73, 1
      %p77 = scmp.eq.s32.totalorder %s13, 1
      %p78 = scmp.ne.s32.totalorder %s73, %s75
      %p79 = scmp.eq.s32.totalorder %s13, 0
      %p80 = por %p78, %p79
      %p81 = scmp.ne.s32.totalorder %s73, %s75
      %p82 = scmp.eq.s32.totalorder %s18, 1
      %p83 = por %p81, %p82
      %p84 = scmp.ne.s32.totalorder %s75, %s76
      %p85 = scmp.eq.s32.totalorder %s18, 0
      %p86 = por %p84, %p85
      %p87 = scmp.ne.s32.totalorder %s75, %s76
      %p88 = scmp.eq.s32.totalorder %s19, 1
      %p89 = por %p87, %p88
      %p91 = scmp.ne.s32.totalorder %s76, %s90
      %p92 = scmp.eq.s32.totalorder %s19, 0
      %p93 = por %p91, %p92
      %s95 = sadd.s32 %s94, 1
      %p98 = scmp.eq.s32.totalorder %s13, 1
      %p99 = scmp.ne.s32.totalorder %s94, %s96
      %p100 = scmp.eq.s32.totalorder %s13, 0
      %p101 = por %p99, %p100
      %p102 = scmp.ne.s32.totalorder %s94, %s96
      %p103 = scmp.eq.s32.totalorder %s18, 1
      %p104 = por %p102, %p103
      %p105 = scmp.ne.s32.totalorder %s96, %s97
      %p106 = scmp.eq.s32.totalorder %s18, 0
      %p107 = por %p105, %p106
      %p108 = scmp.ne.s32.totalorder %s96, %s97
      %p109 = scmp.eq.s32.totalorder %s19, 1
      %p110 = por %p108, %p109
      %p112 = scmp.ne.s32.totalorder %s97, %s111
      %p113 = scmp.eq.s32.totalorder %s19, 0
      %p114 = por %p112, %p113
      %s115 = ssub.s32 %s13, %s20
      %p116 = scmp.eq.s32.totalorder %s115, 0
      %s118 = sadd.s32 %s117, 1
      %s119 = scalar_select %p116, %s117, %s118
      %p122 = pneg %p116
      %p123 = scmp.eq.s32.totalorder %s13, 1
      %p124 = por %p122, %p123
      %p125 = scmp.ne.s32.totalorder %s117, %s120
      %p126 = scmp.eq.s32.totalorder %s13, 0
      %p127 = por %p125, %p126
      %p128 = scmp.ne.s32.totalorder %s117, %s120
      %p129 = scmp.eq.s32.totalorder %s18, 1
      %p130 = por %p128, %p129
      %p131 = scmp.ne.s32.totalorder %s120, %s121
      %p132 = scmp.eq.s32.totalorder %s18, 0
      %p133 = por %p131, %p132
      %p134 = scmp.ne.s32.totalorder %s120, %s121
      %p135 = scmp.eq.s32.totalorder %s19, 1
      %p136 = por %p134, %p135
      %p138 = scmp.ne.s32.totalorder %s121, %s137
      %p139 = scmp.eq.s32.totalorder %s19, 0
      %p140 = por %p138, %p139
      %p141 = scmp.le.s32.totalorder 1, %s13
      %p142 = scmp.lt.s32.totalorder %s13, 3
      %p143 = pnand %p141, %p142
      %p144 = pneg %p143
      // Predicated region
      $region9: #{tpu_custom_call.1} parent=5 // pred_check
        _
      $region10: #{tpu_custom_call.1} parent=5 // pred_check_branch
        %146 = sbr.rel (%p143) target = $region12
      $region11: #{tpu_custom_call.1} parent=5 // pred_region
        %s147 = ssub.s32 %s13, 1
        // Predicated region
        $region13: #{tpu_custom_call.1} parent=11 // pred_check
          %p148 = pneg %p86
        $region14: #{tpu_custom_call.1} parent=11 // pred_check_branch
          %150 = sbr.rel (%p148) target = $region16
        $region15: #{tpu_custom_call.1} parent=11 // pred_region
          _
        $region16: #{tpu_custom_call.1} parent=11 // pred_fallthru
          _
        // Predicated region
        $region17: #{tpu_custom_call.1} parent=11 // pred_check
          %p151 = pneg %p107
        $region18: #{tpu_custom_call.1} parent=11 // pred_check_branch
          %153 = sbr.rel (%p151) target = $region20
        $region19: #{tpu_custom_call.1} parent=11 // pred_region
          _
        $region20: #{tpu_custom_call.1} parent=11 // pred_fallthru
          _
      $region12: #{tpu_custom_call.1} parent=5 // pred_fallthru
        _
      %p154 = scmp.lt.s32.totalorder %s13, 2
      // Predicated region
      $region21: #{tpu_custom_call.1} parent=5 // pred_check
        %p155 = pneg %p154
      $region22: #{tpu_custom_call.1} parent=5 // pred_check_branch
        %157 = sbr.rel (%p155) target = $region24
      $region23: #{tpu_custom_call.1} parent=5 // pred_region
        // Predicated region
        $region25: #{tpu_custom_call.1} parent=23 // pred_check
          %p158 = pneg %p33
        $region26: #{tpu_custom_call.1} parent=23 // pred_check_branch
          %160 = sbr.rel (%p158) target = $region28
        $region27: #{tpu_custom_call.1} parent=23 // pred_region
          %s161 = smul.u32 16, %s13
          %p162 = scmp.lt.s32.totalorder %s161, 31
          %s163 = scalar_select %p162, %s161, 31
          %s164 = smul.addr %s163, 8
          %s165 = scalar_lea.vmem %s0, %s164
          %s166 = smul.u32 16, %s13
        $region28: #{tpu_custom_call.1} parent=23 // pred_fallthru
          _
        // Predicated region
        $region29: #{tpu_custom_call.1} parent=23 // pred_check
          %p167 = pneg %p59
        $region30: #{tpu_custom_call.1} parent=23 // pred_check_branch
          %169 = sbr.rel (%p167) target = $region32
        $region31: #{tpu_custom_call.1} parent=23 // pred_region
          %s170 = smul.u32 16, %s13
          %p171 = scmp.lt.s32.totalorder %s170, 31
          %s172 = scalar_select %p171, %s170, 31
          %s173 = smul.addr %s172, 8
          %s174 = scalar_lea.vmem %s1, %s173
          %s175 = smul.u32 16, %s13
        $region32: #{tpu_custom_call.1} parent=23 // pred_fallthru
          _
      $region24: #{tpu_custom_call.1} parent=5 // pred_fallthru
        _
      %p176 = scmp.le.s32.totalorder 1, %s13
      %p177 = scmp.lt.s32.totalorder %s13, 3
      %p178 = pnand %p176, %p177
      %p179 = pneg %p178
      // Predicated region
      $region33: #{tpu_custom_call.1} parent=5 // pred_check
        _
      $region34: #{tpu_custom_call.1} parent=5 // pred_check_branch
        %181 = sbr.rel (%p178) target = $region36
      $region35: #{tpu_custom_call.1} parent=5 // pred_region
        %s182 = ssub.s32 %s13, 1
        %s183 = smul.u32 16, %s18
        %p184 = scmp.lt.s32.totalorder %s183, 31
        %s185 = scalar_select %p184, %s183, 31
        %s186 = smul.addr %s185, 8
        %s187 = scalar_lea.vmem %s0, %s186
        %p188 = pneg %p39
        %p189 = pneg %p36
        %s190 = smul.u32 16, %s18
        %p191 = scmp.lt.s32.totalorder %s190, 31
        %s192 = scalar_select %p191, %s190, 31
        %s193 = smul.addr %s192, 8
        %s194 = scalar_lea.vmem %s1, %s193
        %p195 = pneg %p65
        %p196 = pneg %p62
        %p197 = pneg %p86
        %p198 = pneg %p83
        %p199 = pneg %p107
        %p200 = pneg %p104
        %p201 = pneg %p133
        %p202 = pneg %p130
        %s203 = sand.u32 %s120, 1
        %s204 = scalar_lea.sflag [#allocation3], %s203
        %s205 = sand.u32 %s120, 1
        %s206 = smul.addr %s205, 128
        %s207 = scalar_lea.vmem [#allocation2], %s206
        %s208 = smul.u32 16, %s18
        %p209 = scmp.lt.s32.totalorder %s208, 31
        %s210 = scalar_select %p209, %s208, 31
        %s211 = smul.addr %s210, 8
        %s212 = scalar_lea.vmem %s0, %s211
        %s213 = smul.u32 16, %s18
        %s214 = smul.u32 16, %s18
        %p215 = scmp.lt.s32.totalorder %s214, 31
        %s216 = scalar_select %p215, %s214, 31
        %s217 = smul.addr %s216, 8
        %s218 = scalar_lea.vmem %s1, %s217
        %s219 = smul.u32 16, %s18
        %s220 = smul.u32 16, %s18
        %v221 = vld [vmem:[%s212] sm:$0xff]
        %v222 = vld [vmem:[%s212 + $0x8] sm:$0xff]
        %v223 = vld [vmem:[%s212 + $0x10] sm:$0xff]
        %v224 = vld [vmem:[%s212 + $0x18] sm:$0xff]
        %v225 = vld [vmem:[%s212 + $0x20] sm:$0xff]
        %v226 = vld [vmem:[%s212 + $0x28] sm:$0xff]
        %v227 = vld [vmem:[%s212 + $0x30] sm:$0xff]
        %v228 = vld [vmem:[%s212 + $0x38] sm:$0xff]
        %v229 = vld [vmem:[%s212 + $0x40] sm:$0xff]
        %v230 = vld [vmem:[%s212 + $0x48] sm:$0xff]
        %v231 = vld [vmem:[%s212 + $0x50] sm:$0xff]
        %v232 = vld [vmem:[%s212 + $0x58] sm:$0xff]
        %v233 = vld [vmem:[%s212 + $0x60] sm:$0xff]
        %v234 = vld [vmem:[%s212 + $0x68] sm:$0xff]
        %v235 = vld [vmem:[%s212 + $0x70] sm:$0xff]
        %v236 = vld [vmem:[%s212 + $0x78] sm:$0xff]
        %v237 = vlaneseq
        %v238 = vand.u32 %v237, 127
        %239 = vset.pattern.permute.xlu0 0
        %240 = vperm.xlu0 %239, %v221
        %v241 = vpop.permute.xlu0 %240
        %242 = vset.pattern.permute.xlu0 0
        %243 = vperm.xlu0 %242, %v222
        %v244 = vpop.permute.xlu0 %243
        %245 = vset.pattern.permute.xlu0 0
        %246 = vperm.xlu0 %245, %v223
        %v247 = vpop.permute.xlu0 %246
        %248 = vset.pattern.permute.xlu0 0
        %249 = vperm.xlu0 %248, %v224
        %v250 = vpop.permute.xlu0 %249
        %251 = vset.pattern.permute.xlu0 0
        %252 = vperm.xlu0 %251, %v225
        %v253 = vpop.permute.xlu0 %252
        %254 = vset.pattern.permute.xlu0 0
        %255 = vperm.xlu0 %254, %v226
        %v256 = vpop.permute.xlu0 %255
        %257 = vset.pattern.permute.xlu0 0
        %258 = vperm.xlu0 %257, %v227
        %v259 = vpop.permute.xlu0 %258
        %260 = vset.pattern.permute.xlu0 0
        %261 = vperm.xlu0 %260, %v228
        %v262 = vpop.permute.xlu0 %261
        %263 = vset.pattern.permute.xlu0 0
        %264 = vperm.xlu0 %263, %v229
        %v265 = vpop.permute.xlu0 %264
        %266 = vset.pattern.permute.xlu0 0
        %267 = vperm.xlu0 %266, %v230
        %v268 = vpop.permute.xlu0 %267
        %269 = vset.pattern.permute.xlu0 0
        %270 = vperm.xlu0 %269, %v231
        %v271 = vpop.permute.xlu0 %270
        %272 = vset.pattern.permute.xlu0 0
        %273 = vperm.xlu0 %272, %v232
        %v274 = vpop.permute.xlu0 %273
        %275 = vset.pattern.permute.xlu0 0
        %276 = vperm.xlu0 %275, %v233
        %v277 = vpop.permute.xlu0 %276
        %278 = vset.pattern.permute.xlu0 0
        %279 = vperm.xlu0 %278, %v234
        %v280 = vpop.permute.xlu0 %279
        %281 = vset.pattern.permute.xlu0 0
        %282 = vperm.xlu0 %281, %v235
        %v283 = vpop.permute.xlu0 %282
        %284 = vset.pattern.permute.xlu0 0
        %285 = vperm.xlu0 %284, %v236
        %v286 = vpop.permute.xlu0 %285
        %vm287 = vcmp.eq.s32.totalorder %v241, %v238
        %vm288 = vcmp.eq.s32.totalorder %v244, %v238
        %vm289 = vcmp.eq.s32.totalorder %v247, %v238
        %vm290 = vcmp.eq.s32.totalorder %v250, %v238
        %vm291 = vcmp.eq.s32.totalorder %v253, %v238
        %vm292 = vcmp.eq.s32.totalorder %v256, %v238
        %vm293 = vcmp.eq.s32.totalorder %v259, %v238
        %vm294 = vcmp.eq.s32.totalorder %v262, %v238
        %vm295 = vcmp.eq.s32.totalorder %v265, %v238
        %vm296 = vcmp.eq.s32.totalorder %v268, %v238
        %vm297 = vcmp.eq.s32.totalorder %v271, %v238
        %vm298 = vcmp.eq.s32.totalorder %v274, %v238
        %vm299 = vcmp.eq.s32.totalorder %v277, %v238
        %vm300 = vcmp.eq.s32.totalorder %v280, %v238
        %vm301 = vcmp.eq.s32.totalorder %v283, %v238
        %vm302 = vcmp.eq.s32.totalorder %v286, %v238
        %v303 = vsel %vm287, 1, 0
        %v304 = vsel %vm288, 1, 0
        %v305 = vsel %vm289, 1, 0
        %v306 = vsel %vm290, 1, 0
        %v307 = vsel %vm291, 1, 0
        %v308 = vsel %vm292, 1, 0
        %v309 = vsel %vm293, 1, 0
        %v310 = vsel %vm294, 1, 0
        %v311 = vsel %vm295, 1, 0
        %v312 = vsel %vm296, 1, 0
        %v313 = vsel %vm297, 1, 0
        %v314 = vsel %vm298, 1, 0
        %v315 = vsel %vm299, 1, 0
        %v316 = vsel %vm300, 1, 0
        %v317 = vsel %vm301, 1, 0
        %v318 = vsel %vm302, 1, 0
        %v319 = vcvt.s32.f32 %v303
        %v320 = vcvt.s32.f32 %v304
        %v321 = vcvt.s32.f32 %v305
        %v322 = vcvt.s32.f32 %v306
        %v323 = vcvt.s32.f32 %v307
        %v324 = vcvt.s32.f32 %v308
        %v325 = vcvt.s32.f32 %v309
        %v326 = vcvt.s32.f32 %v310
        %v327 = vcvt.s32.f32 %v311
        %v328 = vcvt.s32.f32 %v312
        %v329 = vcvt.s32.f32 %v313
        %v330 = vcvt.s32.f32 %v314
        %v331 = vcvt.s32.f32 %v315
        %v332 = vcvt.s32.f32 %v316
        %v333 = vcvt.s32.f32 %v317
        %v334 = vcvt.s32.f32 %v318
        %v335 = vld [vmem:[%s218] sm:$0xff]
        %v336 = vld [vmem:[%s218 + $0x8] sm:$0xff]
        %v337 = vld [vmem:[%s218 + $0x10] sm:$0xff]
        %v338 = vld [vmem:[%s218 + $0x18] sm:$0xff]
        %v339 = vld [vmem:[%s218 + $0x20] sm:$0xff]
        %v340 = vld [vmem:[%s218 + $0x28] sm:$0xff]
        %v341 = vld [vmem:[%s218 + $0x30] sm:$0xff]
        %v342 = vld [vmem:[%s218 + $0x38] sm:$0xff]
        %v343 = vld [vmem:[%s218 + $0x40] sm:$0xff]
        %v344 = vld [vmem:[%s218 + $0x48] sm:$0xff]
        %v345 = vld [vmem:[%s218 + $0x50] sm:$0xff]
        %v346 = vld [vmem:[%s218 + $0x58] sm:$0xff]
        %v347 = vld [vmem:[%s218 + $0x60] sm:$0xff]
        %v348 = vld [vmem:[%s218 + $0x68] sm:$0xff]
        %v349 = vld [vmem:[%s218 + $0x70] sm:$0xff]
        %v350 = vld [vmem:[%s218 + $0x78] sm:$0xff]
        %351 = vset.pattern.permute.xlu0 0
        %352 = vperm.xlu0 %351, %v335
        %v353 = vpop.permute.xlu0 %352
        %354 = vset.pattern.permute.xlu0 0
        %355 = vperm.xlu0 %354, %v336
        %v356 = vpop.permute.xlu0 %355
        %357 = vset.pattern.permute.xlu0 0
        %358 = vperm.xlu0 %357, %v337
        %v359 = vpop.permute.xlu0 %358
        %360 = vset.pattern.permute.xlu0 0
        %361 = vperm.xlu0 %360, %v338
        %v362 = vpop.permute.xlu0 %361
        %363 = vset.pattern.permute.xlu0 0
        %364 = vperm.xlu0 %363, %v339
        %v365 = vpop.permute.xlu0 %364
        %366 = vset.pattern.permute.xlu0 0
        %367 = vperm.xlu0 %366, %v340
        %v368 = vpop.permute.xlu0 %367
        %369 = vset.pattern.permute.xlu0 0
        %370 = vperm.xlu0 %369, %v341
        %v371 = vpop.permute.xlu0 %370
        %372 = vset.pattern.permute.xlu0 0
        %373 = vperm.xlu0 %372, %v342
        %v374 = vpop.permute.xlu0 %373
        %375 = vset.pattern.permute.xlu0 0
        %376 = vperm.xlu0 %375, %v343
        %v377 = vpop.permute.xlu0 %376
        %378 = vset.pattern.permute.xlu0 0
        %379 = vperm.xlu0 %378, %v344
        %v380 = vpop.permute.xlu0 %379
        %381 = vset.pattern.permute.xlu0 0
        %382 = vperm.xlu0 %381, %v345
        %v383 = vpop.permute.xlu0 %382
        %384 = vset.pattern.permute.xlu0 0
        %385 = vperm.xlu0 %384, %v346
        %v386 = vpop.permute.xlu0 %385
        %387 = vset.pattern.permute.xlu0 0
        %388 = vperm.xlu0 %387, %v347
        %v389 = vpop.permute.xlu0 %388
        %390 = vset.pattern.permute.xlu0 0
        %391 = vperm.xlu0 %390, %v348
        %v392 = vpop.permute.xlu0 %391
        %393 = vset.pattern.permute.xlu0 0
        %394 = vperm.xlu0 %393, %v349
        %v395 = vpop.permute.xlu0 %394
        %396 = vset.pattern.permute.xlu0 0
        %397 = vperm.xlu0 %396, %v350
        %v398 = vpop.permute.xlu0 %397
        %vm399 = vcmp.eq.s32.totalorder %v353, %v238
        %vm400 = vcmp.eq.s32.totalorder %v356, %v238
        %vm401 = vcmp.eq.s32.totalorder %v359, %v238
        %vm402 = vcmp.eq.s32.totalorder %v362, %v238
        %vm403 = vcmp.eq.s32.totalorder %v365, %v238
        %vm404 = vcmp.eq.s32.totalorder %v368, %v238
        %vm405 = vcmp.eq.s32.totalorder %v371, %v238
        %vm406 = vcmp.eq.s32.totalorder %v374, %v238
        %vm407 = vcmp.eq.s32.totalorder %v377, %v238
        %vm408 = vcmp.eq.s32.totalorder %v380, %v238
        %vm409 = vcmp.eq.s32.totalorder %v383, %v238
        %vm410 = vcmp.eq.s32.totalorder %v386, %v238
        %vm411 = vcmp.eq.s32.totalorder %v389, %v238
        %vm412 = vcmp.eq.s32.totalorder %v392, %v238
        %vm413 = vcmp.eq.s32.totalorder %v395, %v238
        %vm414 = vcmp.eq.s32.totalorder %v398, %v238
        %v415 = vsel %vm399, 1, 0
        %v416 = vsel %vm400, 1, 0
        %v417 = vsel %vm401, 1, 0
        %v418 = vsel %vm402, 1, 0
        %v419 = vsel %vm403, 1, 0
        %v420 = vsel %vm404, 1, 0
        %v421 = vsel %vm405, 1, 0
        %v422 = vsel %vm406, 1, 0
        %v423 = vsel %vm407, 1, 0
        %v424 = vsel %vm408, 1, 0
        %v425 = vsel %vm409, 1, 0
        %v426 = vsel %vm410, 1, 0
        %v427 = vsel %vm411, 1, 0
        %v428 = vsel %vm412, 1, 0
        %v429 = vsel %vm413, 1, 0
        %v430 = vsel %vm414, 1, 0
        %v431 = vcvt.s32.f32 %v415
        %v432 = vcvt.s32.f32 %v416
        %v433 = vcvt.s32.f32 %v417
        %v434 = vcvt.s32.f32 %v418
        %v435 = vcvt.s32.f32 %v419
        %v436 = vcvt.s32.f32 %v420
        %v437 = vcvt.s32.f32 %v421
        %v438 = vcvt.s32.f32 %v422
        %v439 = vcvt.s32.f32 %v423
        %v440 = vcvt.s32.f32 %v424
        %v441 = vcvt.s32.f32 %v425
        %v442 = vcvt.s32.f32 %v426
        %v443 = vcvt.s32.f32 %v427
        %v444 = vcvt.s32.f32 %v428
        %v445 = vcvt.s32.f32 %v429
        %v446 = vcvt.s32.f32 %v430
        %v447 = vld [vmem:[%s2] sm:$0xff]
        %v448 = vld [vmem:[%s2 + $0x8] sm:$0xff]
        %v449 = vld [vmem:[%s2 + $0x10] sm:$0xff]
        %v450 = vld [vmem:[%s2 + $0x18] sm:$0xff]
        %v451 = vld [vmem:[%s2 + $0x20] sm:$0xff]
        %v452 = vld [vmem:[%s2 + $0x28] sm:$0xff]
        %v453 = vld [vmem:[%s2 + $0x30] sm:$0xff]
        %v454 = vld [vmem:[%s2 + $0x38] sm:$0xff]
        %v455 = vld [vmem:[%s2 + $0x40] sm:$0xff]
        %v456 = vld [vmem:[%s2 + $0x48] sm:$0xff]
        %v457 = vld [vmem:[%s2 + $0x50] sm:$0xff]
        %v458 = vld [vmem:[%s2 + $0x58] sm:$0xff]
        %v459 = vld [vmem:[%s2 + $0x60] sm:$0xff]
        %v460 = vld [vmem:[%s2 + $0x68] sm:$0xff]
        %v461 = vld [vmem:[%s2 + $0x70] sm:$0xff]
        %v462 = vld [vmem:[%s2 + $0x78] sm:$0xff]
        %463 = vmatpush.msra.mxu0 %v462
        %464 = vmatpush.msra.mxu0 %v461
        %465 = vmatpush.msra.mxu0 %v460
        %466 = vmatpush.msra.mxu0 %v459
        %467 = vmatpush.msra.mxu0 %v458
        %468 = vmatpush.msra.mxu0 %v457
        %469 = vmatpush.msra.mxu0 %v456
        %470 = vmatpush.msra.mxu0 %v455
        %471 = vmatpush.msra.mxu0 %v454
        %472 = vmatpush.msra.mxu0 %v453
        %473 = vmatpush.msra.mxu0 %v452
        %474 = vmatpush.msra.mxu0 %v451
        %475 = vmatpush.msra.mxu0 %v450
        %476 = vmatpush.msra.mxu0 %v449
        %477 = vmatpush.msra.mxu0 %v448
        %478 = vmatpush.msra.mxu0 %v447
        %479 = vmatmul.f32.gmra.mxu0 %v319
        %v480 = vpop.f32.mrf.mxu0
        %v481 = vadd.f32 0.0, %v480
        %482 = vmatmul.f32.gmra.mxu0 %v320
        %v483 = vpop.f32.mrf.mxu0
        %v484 = vadd.f32 0.0, %v483
        %485 = vmatmul.f32.gmra.mxu0 %v321
        %v486 = vpop.f32.mrf.mxu0
        %v487 = vadd.f32 0.0, %v486
        %488 = vmatmul.f32.gmra.mxu0 %v322
        %v489 = vpop.f32.mrf.mxu0
        %v490 = vadd.f32 0.0, %v489
        %491 = vmatmul.f32.gmra.mxu0 %v323
        %v492 = vpop.f32.mrf.mxu0
        %v493 = vadd.f32 0.0, %v492
        %494 = vmatmul.f32.gmra.mxu0 %v324
        %v495 = vpop.f32.mrf.mxu0
        %v496 = vadd.f32 0.0, %v495
        %497 = vmatmul.f32.gmra.mxu0 %v325
        %v498 = vpop.f32.mrf.mxu0
        %v499 = vadd.f32 0.0, %v498
        %500 = vmatmul.f32.gmra.mxu0 %v326
        %v501 = vpop.f32.mrf.mxu0
        %v502 = vadd.f32 0.0, %v501
        %503 = vmatmul.f32.gmra.mxu0 %v327
        %v504 = vpop.f32.mrf.mxu0
        %v505 = vadd.f32 0.0, %v504
        %506 = vmatmul.f32.gmra.mxu0 %v328
        %v507 = vpop.f32.mrf.mxu0
        %v508 = vadd.f32 0.0, %v507
        %509 = vmatmul.f32.gmra.mxu0 %v329
        %v510 = vpop.f32.mrf.mxu0
        %v511 = vadd.f32 0.0, %v510
        %512 = vmatmul.f32.gmra.mxu0 %v330
        %v513 = vpop.f32.mrf.mxu0
        %v514 = vadd.f32 0.0, %v513
        %515 = vmatmul.f32.gmra.mxu0 %v331
        %v516 = vpop.f32.mrf.mxu0
        %v517 = vadd.f32 0.0, %v516
        %518 = vmatmul.f32.gmra.mxu0 %v332
        %v519 = vpop.f32.mrf.mxu0
        %v520 = vadd.f32 0.0, %v519
        %521 = vmatmul.f32.gmra.mxu0 %v333
        %v522 = vpop.f32.mrf.mxu0
        %v523 = vadd.f32 0.0, %v522
        %524 = vmatmul.f32.gmra.mxu0 %v334
        %v525 = vpop.f32.mrf.mxu0
        %v526 = vadd.f32 0.0, %v525
        %527 = vdwg.mxu0
        %v528 = vld [vmem:[%s3] sm:$0xff]
        %v529 = vld [vmem:[%s3 + $0x8] sm:$0xff]
        %v530 = vld [vmem:[%s3 + $0x10] sm:$0xff]
        %v531 = vld [vmem:[%s3 + $0x18] sm:$0xff]
        %v532 = vld [vmem:[%s3 + $0x20] sm:$0xff]
        %v533 = vld [vmem:[%s3 + $0x28] sm:$0xff]
        %v534 = vld [vmem:[%s3 + $0x30] sm:$0xff]
        %v535 = vld [vmem:[%s3 + $0x38] sm:$0xff]
        %v536 = vld [vmem:[%s3 + $0x40] sm:$0xff]
        %v537 = vld [vmem:[%s3 + $0x48] sm:$0xff]
        %v538 = vld [vmem:[%s3 + $0x50] sm:$0xff]
        %v539 = vld [vmem:[%s3 + $0x58] sm:$0xff]
        %v540 = vld [vmem:[%s3 + $0x60] sm:$0xff]
        %v541 = vld [vmem:[%s3 + $0x68] sm:$0xff]
        %v542 = vld [vmem:[%s3 + $0x70] sm:$0xff]
        %v543 = vld [vmem:[%s3 + $0x78] sm:$0xff]
        %544 = vmatpush.msra.mxu0 %v543
        %545 = vmatpush.msra.mxu0 %v542
        %546 = vmatpush.msra.mxu0 %v541
        %547 = vmatpush.msra.mxu0 %v540
        %548 = vmatpush.msra.mxu0 %v539
        %549 = vmatpush.msra.mxu0 %v538
        %550 = vmatpush.msra.mxu0 %v537
        %551 = vmatpush.msra.mxu0 %v536
        %552 = vmatpush.msra.mxu0 %v535
        %553 = vmatpush.msra.mxu0 %v534
        %554 = vmatpush.msra.mxu0 %v533
        %555 = vmatpush.msra.mxu0 %v532
        %556 = vmatpush.msra.mxu0 %v531
        %557 = vmatpush.msra.mxu0 %v530
        %558 = vmatpush.msra.mxu0 %v529
        %559 = vmatpush.msra.mxu0 %v528
        %560 = vmatmul.f32.gmra.mxu0 %v431
        %v561 = vpop.f32.mrf.mxu0
        %v562 = vadd.f32 0.0, %v561
        %563 = vmatmul.f32.gmra.mxu0 %v432
        %v564 = vpop.f32.mrf.mxu0
        %v565 = vadd.f32 0.0, %v564
        %566 = vmatmul.f32.gmra.mxu0 %v433
        %v567 = vpop.f32.mrf.mxu0
        %v568 = vadd.f32 0.0, %v567
        %569 = vmatmul.f32.gmra.mxu0 %v434
        %v570 = vpop.f32.mrf.mxu0
        %v571 = vadd.f32 0.0, %v570
        %572 = vmatmul.f32.gmra.mxu0 %v435
        %v573 = vpop.f32.mrf.mxu0
        %v574 = vadd.f32 0.0, %v573
        %575 = vmatmul.f32.gmra.mxu0 %v436
        %v576 = vpop.f32.mrf.mxu0
        %v577 = vadd.f32 0.0, %v576
        %578 = vmatmul.f32.gmra.mxu0 %v437
        %v579 = vpop.f32.mrf.mxu0
        %v580 = vadd.f32 0.0, %v579
        %581 = vmatmul.f32.gmra.mxu0 %v438
        %v582 = vpop.f32.mrf.mxu0
        %v583 = vadd.f32 0.0, %v582
        %584 = vmatmul.f32.gmra.mxu0 %v439
        %v585 = vpop.f32.mrf.mxu0
        %v586 = vadd.f32 0.0, %v585
        %587 = vmatmul.f32.gmra.mxu0 %v440
        %v588 = vpop.f32.mrf.mxu0
        %v589 = vadd.f32 0.0, %v588
        %590 = vmatmul.f32.gmra.mxu0 %v441
        %v591 = vpop.f32.mrf.mxu0
        %v592 = vadd.f32 0.0, %v591
        %593 = vmatmul.f32.gmra.mxu0 %v442
        %v594 = vpop.f32.mrf.mxu0
        %v595 = vadd.f32 0.0, %v594
        %596 = vmatmul.f32.gmra.mxu0 %v443
        %v597 = vpop.f32.mrf.mxu0
        %v598 = vadd.f32 0.0, %v597
        %599 = vmatmul.f32.gmra.mxu0 %v444
        %v600 = vpop.f32.mrf.mxu0
        %v601 = vadd.f32 0.0, %v600
        %602 = vmatmul.f32.gmra.mxu0 %v445
        %v603 = vpop.f32.mrf.mxu0
        %v604 = vadd.f32 0.0, %v603
        %605 = vmatmul.f32.gmra.mxu0 %v446
        %v606 = vpop.f32.mrf.mxu0
        %v607 = vadd.f32 0.0, %v606
        %608 = vdwg.mxu0
        %v609 = vmul.f32 %v481, %v562
        %v610 = vmul.f32 %v484, %v565
        %v611 = vmul.f32 %v487, %v568
        %v612 = vmul.f32 %v490, %v571
        %v613 = vmul.f32 %v493, %v574
        %v614 = vmul.f32 %v496, %v577
        %v615 = vmul.f32 %v499, %v580
        %v616 = vmul.f32 %v502, %v583
        %v617 = vmul.f32 %v505, %v586
        %v618 = vmul.f32 %v508, %v589
        %v619 = vmul.f32 %v511, %v592
        %v620 = vmul.f32 %v514, %v595
        %v621 = vmul.f32 %v517, %v598
        %v622 = vmul.f32 %v520, %v601
        %v623 = vmul.f32 %v523, %v604
        %v624 = vmul.f32 %v526, %v607
        %625 = vst [vmem:[%s207] sm:$0xff] %v609
        %626 = vst [vmem:[%s207 + $0x8] sm:$0xff] %v610
        %627 = vst [vmem:[%s207 + $0x10] sm:$0xff] %v611
        %628 = vst [vmem:[%s207 + $0x18] sm:$0xff] %v612
        %629 = vst [vmem:[%s207 + $0x20] sm:$0xff] %v613
        %630 = vst [vmem:[%s207 + $0x28] sm:$0xff] %v614
        %631 = vst [vmem:[%s207 + $0x30] sm:$0xff] %v615
        %632 = vst [vmem:[%s207 + $0x38] sm:$0xff] %v616
        %633 = vst [vmem:[%s207 + $0x40] sm:$0xff] %v617
        %634 = vst [vmem:[%s207 + $0x48] sm:$0xff] %v618
        %635 = vst [vmem:[%s207 + $0x50] sm:$0xff] %v619
        %636 = vst [vmem:[%s207 + $0x58] sm:$0xff] %v620
        %637 = vst [vmem:[%s207 + $0x60] sm:$0xff] %v621
        %638 = vst [vmem:[%s207 + $0x68] sm:$0xff] %v622
        %639 = vst [vmem:[%s207 + $0x70] sm:$0xff] %v623
        %640 = vst [vmem:[%s207 + $0x78] sm:$0xff] %v624
        %s641 = sand.u32 %s120, 1
        %s642 = scalar_lea.sflag [#allocation3], %s641
        %s643 = sand.u32 %s120, 1
        %s644 = smul.addr %s643, 128
        %s645 = scalar_lea.vmem [#allocation2], %s644
        // Predicated region
        $region37: #{tpu_custom_call.1} parent=35 // pred_check
          %p646 = pneg %p130
        $region38: #{tpu_custom_call.1} parent=35 // pred_check_branch
          %648 = sbr.rel (%p646) target = $region40
        $region39: #{tpu_custom_call.1} parent=35 // pred_region
          %s649 = smul.u32 16, %s18
          %651 = vsyncadd %s642, 0
          %s652 = smul.addr %s649, 8
          %s653 = scalar_lea.hbm %s4, %s652
          %s654 = sshll.u32 %s645, 4
          %s655 = int_to_ptr.vmem [resolvable:$true] %s654
          %s656 = sshll.u32 %s653, 4
          %s657 = int_to_ptr.hbm [resolvable:$true] %s656
          %662 = dma.vmem_to_hbm [thread:$0]  %s655, 2048, %s657, %s642, 128, 128, 8
        $region40: #{tpu_custom_call.1} parent=35 // pred_fallthru
          _
      $region36: #{tpu_custom_call.1} parent=5 // pred_fallthru
        _
      %p663 = scmp.le.s32.totalorder 2, %s13
      // Predicated region
      $region41: #{tpu_custom_call.1} parent=5 // pred_check
        %p664 = pneg %p663
      $region42: #{tpu_custom_call.1} parent=5 // pred_check_branch
        %666 = sbr.rel (%p664) target = $region44
      $region43: #{tpu_custom_call.1} parent=5 // pred_region
        %s667 = ssub.s32 %s13, 2
        // Predicated region
        $region45: #{tpu_custom_call.1} parent=43 // pred_check
          %p668 = pneg %p136
        $region46: #{tpu_custom_call.1} parent=43 // pred_check_branch
          %670 = sbr.rel (%p668) target = $region48
        $region47: #{tpu_custom_call.1} parent=43 // pred_region
          %s671 = sand.u32 %s121, 1
          %s672 = scalar_lea.sflag [#allocation3], %s671
          %s673 = sand.u32 %s121, 1
          %s674 = smul.addr %s673, 128
          %s675 = scalar_lea.vmem [#allocation2], %s674
          %677 = dma.done %s672, 2048
        $region48: #{tpu_custom_call.1} parent=43 // pred_fallthru
          _
      $region44: #{tpu_custom_call.1} parent=5 // pred_fallthru
        _
    $region6: #{tpu_custom_call.1} parent=1 // loop_footer
      %s17 = sadd.s32 1, %s13
    $region7: #{tpu_custom_call.1} parent=1 // loop_footer_branch
      %12 = sbr.rel target = $region3
    $region8: #{tpu_custom_call.1} parent=1 // loop_exit
      _
    %678 = vsyncpa [#allocation3], 1
    %s679 = scalar_lea.sflag [#allocation3], 1
    %680 = vsyncpa %s679, 1

</llo_original>
